<compile_context>
chip_gen: v5e
topology: v5e:2x2
jax: 0.10.0
libtpu: 0.0.40
codegen_flags: <defaults>
</compile_context>

<pallas_src>
import jax
import jax.numpy as jnp
from jax import lax
from jax.experimental import pallas as pl
from jax.experimental.pallas import tpu as pltpu

BN_EPS = 1e-5
LANE = 128


def _round_up(x, m):
    return (x + m - 1) // m * m


def s_block_kernel(x_ref, w_ref, gamma_ref, beta_ref, o_ref, acc_ref):
    """One (C_out tile, K tile) grid step.

    x_ref:     (N, TK)   bf16  full batch, K-tile of input channels
    w_ref:     (TC, TK)  bf16  nn.Linear weight tile, native (out, in) layout
    gamma_ref: (1, TC)   f32
    beta_ref:  (1, TC)   f32
    o_ref:     (N, TC)   f32
    acc_ref:   (N, TC)   f32   VMEM scratch, persists across the K axis
    """
    k = pl.program_id(1)

    @pl.when(k == 0)
    def _():
        acc_ref[...] = jnp.zeros_like(acc_ref)

    # y_tile += x_tile @ w_tile.T  (contract x axis 1 against weight axis 1)
    acc_ref[...] += lax.dot_general(
        x_ref[...], w_ref[...],
        dimension_numbers=(((1,), (1,)), ((), ())),
        preferred_element_type=jnp.float32)

    @pl.when(k == pl.num_programs(1) - 1)
    def _():
        y = acc_ref[...]
        # Training-mode BatchNorm1d: biased batch statistics over the batch
        # axis, folded into a single per-channel scale/bias.
        mean = jnp.mean(y, axis=0, keepdims=True)
        mean_sq = jnp.mean(y * y, axis=0, keepdims=True)
        var = jnp.maximum(mean_sq - mean * mean, 0.0)
        scale = gamma_ref[...] * lax.rsqrt(var + BN_EPS)
        bias = beta_ref[...] - mean * scale
        o_ref[...] = (1.0 + jnp.tanh(y * scale + bias)).astype(o_ref.dtype)


def s_block(x, weight, gamma, beta):
    """x: (N, C) f32; weight: (C, C) as nn.Linear stores it; gamma/beta: (C,)."""
    N, C = x.shape
    assert weight.shape == (C, C)

    # Lane-dense, MXU-aligned channel padding: 256-wide tiles when possible
    # (v6e/v7x MXU dim), else 128 (v5e MXU dim / lane width).
    c_pad = _round_up(C, LANE)
    tile = 256 if (c_pad % 256 == 0) else 128

    pad = c_pad - C
    if pad:
        x = jnp.pad(x, ((0, 0), (0, pad)))
        weight = jnp.pad(weight, ((0, pad), (0, pad)))
        gamma = jnp.pad(gamma, (0, pad))
        beta = jnp.pad(beta, (0, pad))

    # bf16 MXU inputs; BN re-normalizes so accuracy impact is negligible.
    xb = x.astype(jnp.bfloat16)
    wb = weight.astype(jnp.bfloat16)
    gamma2 = gamma.reshape(1, c_pad).astype(jnp.float32)
    beta2 = beta.reshape(1, c_pad).astype(jnp.float32)

    n_out_tiles = c_pad // tile
    n_k_tiles = c_pad // tile

    out = pl.pallas_call(
        s_block_kernel,
        out_shape=jax.ShapeDtypeStruct((N, c_pad), jnp.float32),
        grid_spec=pltpu.PrefetchScalarGridSpec(
            num_scalar_prefetch=0,
            grid=(n_out_tiles, n_k_tiles),                      # (C_out, K)
            in_specs=[
                pl.BlockSpec((N, tile), lambda j, k: (0, k)),     # x
                pl.BlockSpec((tile, tile), lambda j, k: (j, k)),  # weight
                pl.BlockSpec((1, tile), lambda j, k: (0, j)),     # gamma
                pl.BlockSpec((1, tile), lambda j, k: (0, j)),     # beta
            ],
            out_specs=pl.BlockSpec((N, tile), lambda j, k: (0, j)),
            scratch_shapes=[pltpu.VMEM((N, tile), jnp.float32)],
        ),
        compiler_params=pltpu.CompilerParams(
            # C_out tiles are independent -> shard across v7x's two TensorCores;
            # K is the accumulator/reduction axis.
            dimension_semantics=("parallel", "arbitrary"),
            vmem_limit_bytes=32 * 1024 * 1024,
        ),
    )(xb, wb, gamma2, beta2)

    return out[:, :C] if pad else out


def s_block_ref(x, weight, gamma, beta):
    """Pure-JAX f32 reference mirroring PyTorch S_Block.forward (train-mode BN)."""
    y = x @ weight.T
    mean = jnp.mean(y, axis=0, keepdims=True)
    var = jnp.mean((y - mean) ** 2, axis=0, keepdims=True)
    y_hat = (y - mean) / jnp.sqrt(var + BN_EPS)
    y_bn = y_hat * gamma[None, :] + beta[None, :]
    return 1.0 + jnp.tanh(y_bn)


if __name__ == "__main__":
    key = jax.random.PRNGKey(0)

    def make_case(k, n, c):
        kx, kw, kg, kb = jax.random.split(k, 4)
        x = jax.random.normal(kx, (n, c), dtype=jnp.float32)
        bound = 1.0 / jnp.sqrt(jnp.float32(c))
        weight = jax.random.uniform(kw, (c, c), minval=-bound, maxval=bound,
                                    dtype=jnp.float32)
        gamma = 1.0 + 0.1 * jax.random.normal(kg, (c,), dtype=jnp.float32)
        beta = 0.1 * jax.random.normal(kb, (c,), dtype=jnp.float32)
        return x, weight, gamma, beta

    k1, k2 = jax.random.split(key)

    # Case 1: module-sized shapes (batch=8, in_c=32); exercises channel padding
    # to a lane-dense 128-wide tile and the single-tile path.
    x, w, g, b = make_case(k1, 8, 32)
    out = jax.block_until_ready(s_block(x, w, g, b))
    ref = s_block_ref(x, w, g, b)
    assert out.shape == (8, 32)
    # bf16 matmul inputs -> looser tolerance than pure f32.
    assert jnp.allclose(out, ref, atol=5e-2, rtol=5e-2), "case1 mismatch vs ref"

    # Case 2: multi-tile grid (3x3 tiles of 128); exercises the K accumulator
    # (pl.when init/finalize) and the parallel C_out axis.
    x, w, g, b = make_case(k2, 16, 384)
    out = jax.block_until_ready(s_block(x, w, g, b))
    ref = s_block_ref(x, w, g, b)
    assert out.shape == (16, 384)
    assert jnp.allclose(out, ref, atol=5e-2, rtol=5e-2), "case2 mismatch vs ref"

    print("KERNEL_OK")
</pallas_src>

<mosaic_0001>
module attributes {stable_mosaic.version = 11 : i64} {
  func.func @s_block_kernel(%arg0: i32, %arg1: i32, %arg2: memref<8x128xbf16, #tpu.memory_space<vmem>>, %arg3: memref<128x128xbf16, #tpu.memory_space<vmem>>, %arg4: memref<1x128xf32, #tpu.memory_space<vmem>>, %arg5: memref<1x128xf32, #tpu.memory_space<vmem>>, %arg6: memref<8x128xf32, #tpu.memory_space<vmem>>, %arg7: memref<8x128xf32, #tpu.memory_space<vmem>>) attributes {dimension_semantics = [#tpu.dimension_semantics<parallel>, #tpu.dimension_semantics<arbitrary>], iteration_bounds = array<i64: 1, 1>, scalar_prefetch = 0 : i64, scratch_operands = 1 : i64, tpu.core_type = #tpu.core_type<tc>, window_params = [{transform_indices = @transform_0, window_bounds = array<i64: 8, 128>}, {transform_indices = @transform_1, window_bounds = array<i64: 128, 128>}, {transform_indices = @transform_2, window_bounds = array<i64: 1, 128>}, {transform_indices = @transform_3, window_bounds = array<i64: 1, 128>}, {transform_indices = @transform_4, window_bounds = array<i64: 8, 128>}]} {
    %c0_i32 = arith.constant 0 : i32
    %0 = arith.cmpi eq, %arg1, %c0_i32 : i32
    %1 = arith.extui %0 : i1 to i32
    %c0_i32_0 = arith.constant 0 : i32
    %2 = arith.cmpi ne, %1, %c0_i32_0 : i32
    scf.if %2 {
      %cst_10 = arith.constant 0.000000e+00 : f32
      %12 = vector.broadcast %cst_10 : f32 to vector<8x128xf32>
      %c0_11 = arith.constant 0 : index
      %c0_12 = arith.constant 0 : index
      %13 = vector.load %arg7[%c0_11, %c0_12] : memref<8x128xf32, #tpu.memory_space<vmem>>, vector<8x128xf32>
      tpu.vector_store %arg7[%c0_11, %c0_12], %12 {strides = array<i32>} : memref<8x128xf32, #tpu.memory_space<vmem>>, vector<8x128xf32>,
    } else {
    }
    %c0 = arith.constant 0 : index
    %c0_1 = arith.constant 0 : index
    %3 = vector.load %arg7[%c0, %c0_1] : memref<8x128xf32, #tpu.memory_space<vmem>>, vector<8x128xf32>
    %c0_2 = arith.constant 0 : index
    %c0_3 = arith.constant 0 : index
    %4 = vector.load %arg2[%c0_2, %c0_3] : memref<8x128xbf16, #tpu.memory_space<vmem>>, vector<8x128xbf16>
    %c0_4 = arith.constant 0 : index
    %c0_5 = arith.constant 0 : index
    %5 = vector.load %arg3[%c0_4, %c0_5] : memref<128x128xbf16, #tpu.memory_space<vmem>>, vector<128x128xbf16>
    %cst = arith.constant dense<0.000000e+00> : vector<8x128xf32>
    %6 = tpu.matmul %4, %5, %cst {dimension_numbers = #tpu.dot_dimension_numbers<[1], [1], [0], [0], [0, 0, 1, 0], [], []>} : vector<8x128xbf16>, vector<128x128xbf16>, vector<8x128xf32> -> vector<8x128xf32>
    %7 = arith.addf %3, %6 : vector<8x128xf32>
    %c0_6 = arith.constant 0 : index
    %c0_7 = arith.constant 0 : index
    %8 = vector.load %arg7[%c0_6, %c0_7] : memref<8x128xf32, #tpu.memory_space<vmem>>, vector<8x128xf32>
    tpu.vector_store %arg7[%c0_6, %c0_7], %7 {strides = array<i32>} : memref<8x128xf32, #tpu.memory_space<vmem>>, vector<8x128xf32>,
    %c0_i32_8 = arith.constant 0 : i32
    %9 = arith.cmpi eq, %arg1, %c0_i32_8 : i32
    %10 = arith.extui %9 : i1 to i32
    %c0_i32_9 = arith.constant 0 : i32
    %11 = arith.cmpi ne, %10, %c0_i32_9 : i32
    scf.if %11 {
      %c0_10 = arith.constant 0 : index
      %c0_11 = arith.constant 0 : index
      %12 = vector.load %arg7[%c0_10, %c0_11] : memref<8x128xf32, #tpu.memory_space<vmem>>, vector<8x128xf32>
      %cst_12 = arith.constant dense<0.000000e+00> : vector<128xf32>
      %13 = vector.multi_reduction <add>, %12, %cst_12 [0] : vector<8x128xf32> to vector<128xf32>
      %14 = vector.shape_cast %13 : vector<128xf32> to vector<1x128xf32>
      %cst_13 = arith.constant 8.000000e+00 : f32
      %15 = vector.broadcast %cst_13 : f32 to vector<1x128xf32>
      %16 = arith.divf %14, %15 : vector<1x128xf32>
      %17 = arith.mulf %12, %12 : vector<8x128xf32>
      %cst_14 = arith.constant dense<0.000000e+00> : vector<128xf32>
      %18 = vector.multi_reduction <add>, %17, %cst_14 [0] : vector<8x128xf32> to vector<128xf32>
      %19 = vector.shape_cast %18 : vector<128xf32> to vector<1x128xf32>
      %cst_15 = arith.constant 8.000000e+00 : f32
      %20 = vector.broadcast %cst_15 : f32 to vector<1x128xf32>
      %21 = arith.divf %19, %20 : vector<1x128xf32>
      %22 = arith.mulf %16, %16 : vector<1x128xf32>
      %23 = arith.subf %21, %22 : vector<1x128xf32>
      %cst_16 = arith.constant 0.000000e+00 : f32
      %24 = vector.broadcast %cst_16 : f32 to vector<1x128xf32>
      %25 = arith.maximumf %23, %24 : vector<1x128xf32>
      %c0_17 = arith.constant 0 : index
      %c0_18 = arith.constant 0 : index
      %26 = vector.load %arg4[%c0_17, %c0_18] : memref<1x128xf32, #tpu.memory_space<vmem>>, vector<1x128xf32>
      %cst_19 = arith.constant 9.99999974E-6 : f32
      %27 = vector.broadcast %cst_19 : f32 to vector<1x128xf32>
      %28 = arith.addf %25, %27 : vector<1x128xf32>
      %29 = math.rsqrt %28 : vector<1x128xf32>
      %30 = arith.mulf %26, %29 : vector<1x128xf32>
      %c0_20 = arith.constant 0 : index
      %c0_21 = arith.constant 0 : index
      %31 = vector.load %arg5[%c0_20, %c0_21] : memref<1x128xf32, #tpu.memory_space<vmem>>, vector<1x128xf32>
      %32 = arith.mulf %16, %30 : vector<1x128xf32>
      %33 = arith.subf %31, %32 : vector<1x128xf32>
      %34 = vector.broadcast %30 : vector<1x128xf32> to vector<8x128xf32>
      %35 = arith.mulf %12, %34 : vector<8x128xf32>
      %36 = vector.broadcast %33 : vector<1x128xf32> to vector<8x128xf32>
      %37 = arith.addf %35, %36 : vector<8x128xf32>
      %38 = math.tanh %37 : vector<8x128xf32>
      %cst_22 = arith.constant 1.000000e+00 : f32
      %39 = vector.broadcast %cst_22 : f32 to vector<8x128xf32>
      %40 = arith.addf %39, %38 : vector<8x128xf32>
      %c0_23 = arith.constant 0 : index
      %c0_24 = arith.constant 0 : index
      %41 = vector.load %arg6[%c0_23, %c0_24] : memref<8x128xf32, #tpu.memory_space<vmem>>, vector<8x128xf32>
      tpu.vector_store %arg6[%c0_23, %c0_24], %40 {strides = array<i32>} : memref<8x128xf32, #tpu.memory_space<vmem>>, vector<8x128xf32>,
    } else {
    }
    return
  }
  func.func @transform_0(%arg0: i32, %arg1: i32) -> (i32, i32) {
    %c0_i32 = arith.constant 0 : i32
    %c0_i32_0 = arith.constant 0 : i32
    return %c0_i32, %arg1 : i32, i32
  }
  func.func @transform_1(%arg0: i32, %arg1: i32) -> (i32, i32) {
    %c0_i32 = arith.constant 0 : i32
    return %arg0, %arg1 : i32, i32
  }
  func.func @transform_2(%arg0: i32, %arg1: i32) -> (i32, i32) {
    %c0_i32 = arith.constant 0 : i32
    %c0_i32_0 = arith.constant 0 : i32
    return %c0_i32, %arg0 : i32, i32
  }
  func.func @transform_3(%arg0: i32, %arg1: i32) -> (i32, i32) {
    %c0_i32 = arith.constant 0 : i32
    %c0_i32_0 = arith.constant 0 : i32
    return %c0_i32, %arg0 : i32, i32
  }
  func.func @transform_4(%arg0: i32, %arg1: i32) -> (i32, i32) {
    %c0_i32 = arith.constant 0 : i32
    %c0_i32_0 = arith.constant 0 : i32
    return %c0_i32, %arg0 : i32, i32
  }
}

</mosaic_0001>

<llo_original>
// kernel: tpu_custom_call.1
$region0: #{tpu_custom_call.1}
  #allocation0 [shape = 'u32[]', space=smem, size = 0x4, offset = 0x4, fixed_abs, tag = 'smem constant byte address 0x4 - core index']
  #allocation1 [shape = 'u32[72,128]{1,0:T(1,128)}', space=vmem, size = 0x9000, scoped, tag = 'internal scratch']
  #allocation2 [shape = 'f32[8,128]{1,0:T(8,128)}', space=vmem, size = 0x1000, scoped, tag = 'scratch operand']
  %s0 = inlined_call_operand.hbm [shape: bf16[8,128], index: 0, kind: input, shape index: {}]
  %s1 = inlined_call_operand.hbm [shape: bf16[128,128], index: 1, kind: input, shape index: {}]
  %s2 = inlined_call_operand.vmem [shape: f32[1,128], index: 2, kind: input, shape index: {}]
  %s3 = inlined_call_operand.vmem [shape: f32[1,128], index: 3, kind: input, shape index: {}]
  %s4 = inlined_call_operand.hbm [shape: f32[8,128], index: 4, kind: output, shape index: {}]
  %s5 = sld [smem:[#allocation0]]
  $region42: #{tpu_custom_call.1} parent=0
    _
  %s7 = ssub.s32 1, %s5
  %s8 = scalar_select 0, %s7, %s5
  $region1: #{tpu_custom_call.1} parent=0
    #allocation3 [shape = 'u8[2048]{0}', space=vmem, size = 0x800, scoped, tag = 'input window, operand 0, single buffered']
    #allocation4 [shape = 's32[1]{0}', space=sflag, size = 0x4, scoped, tag = 'scoped memory for tpu_custom_call.1']
    #allocation5 [shape = 's32[1]{0}', space=sflag, size = 0x4, scoped, tag = 'scoped memory for tpu_custom_call.1']
    #allocation6 [shape = 'u8[32768]{0}', space=vmem, size = 0x8000, scoped, tag = 'input window, operand 1, single buffered']
    #allocation7 [shape = 's32[1]{0}', space=sflag, size = 0x4, scoped, tag = 'scoped memory for tpu_custom_call.1']
    #allocation8 [shape = 'u8[4096]{0}', space=vmem, size = 0x1000, scoped, tag = 'output window, operand 0, single buffered']
    %9 = vsyncpa [#allocation4], 0
    %10 = vsyncpa [#allocation7], 0
    %11 = vsyncpa [#allocation5], 0
    // Predicated region
    $region2: #{tpu_custom_call.1} parent=1 // pred_check
      _
    $region3: #{tpu_custom_call.1} parent=1 // pred_check_branch
      %13 = sbr.rel (0) target = $region5
    $region4: #{tpu_custom_call.1} parent=1 // pred_region
      %15 = vsyncadd [#allocation4], 0
      %s17 = sshll.u32 %s0, 4
      %s18 = int_to_ptr.hbm [resolvable:$true] %s17
      %s19 = sshll.u32 [#allocation3], 4
      %s20 = int_to_ptr.vmem [resolvable:$true] %s19
      %22 = dma.hbm_to_vmem [thread:$0]  %s18, 64, %s20, [#allocation4]
    $region5: #{tpu_custom_call.1} parent=1 // pred_fallthru
      _
    // Predicated region
    $region6: #{tpu_custom_call.1} parent=1 // pred_check
      _
    $region7: #{tpu_custom_call.1} parent=1 // pred_check_branch
      %24 = sbr.rel (0) target = $region9
    $region8: #{tpu_custom_call.1} parent=1 // pred_region
      %26 = vsyncadd [#allocation7], 0
      %s27 = sshll.u32 %s1, 4
      %s28 = int_to_ptr.hbm [resolvable:$true] %s27
      %s29 = sshll.u32 [#allocation6], 4
      %s30 = int_to_ptr.vmem [resolvable:$true] %s29
      %35 = dma.hbm_to_vmem [thread:$0]  %s28, 1024, %s30, [#allocation7], 64, 64, 4
    $region9: #{tpu_custom_call.1} parent=1 // pred_fallthru
      _
    // Predicated region
    $region10: #{tpu_custom_call.1} parent=1 // pred_check
      _
    $region11: #{tpu_custom_call.1} parent=1 // pred_check_branch
      %37 = sbr.rel (0) target = $region13
    $region12: #{tpu_custom_call.1} parent=1 // pred_region
      _
    $region13: #{tpu_custom_call.1} parent=1 // pred_fallthru
      _
    // Predicated region
    $region14: #{tpu_custom_call.1} parent=1 // pred_check
      _
    $region15: #{tpu_custom_call.1} parent=1 // pred_check_branch
      %39 = sbr.rel (0) target = $region17
    $region16: #{tpu_custom_call.1} parent=1 // pred_region
      _
    $region17: #{tpu_custom_call.1} parent=1 // pred_fallthru
      _
    // Predicated region
    $region18: #{tpu_custom_call.1} parent=1 // pred_check
      _
    $region19: #{tpu_custom_call.1} parent=1 // pred_check_branch
      %41 = sbr.rel (0) target = $region21
    $region20: #{tpu_custom_call.1} parent=1 // pred_region
      %43 = dma.done [#allocation4], 64
    $region21: #{tpu_custom_call.1} parent=1 // pred_fallthru
      _
    // Predicated region
    $region22: #{tpu_custom_call.1} parent=1 // pred_check
      _
    $region23: #{tpu_custom_call.1} parent=1 // pred_check_branch
      %45 = sbr.rel (0) target = $region25
    $region24: #{tpu_custom_call.1} parent=1 // pred_region
      %47 = dma.done [#allocation7], 1024
    $region25: #{tpu_custom_call.1} parent=1 // pred_fallthru
      _
    %p48 = scmp.eq.s32.totalorder 0, 0
    // Predicated region
    $region26: #{tpu_custom_call.1} parent=1 // pred_check
      %p49 = pneg %p48
    $region27: #{tpu_custom_call.1} parent=1 // pred_check_branch
      %51 = sbr.rel (%p49) target = $region29
    $region28: #{tpu_custom_call.1} parent=1 // pred_region
      %52 = vst [vmem:[#allocation2] sm:$0xff] 0.0
    $region29: #{tpu_custom_call.1} parent=1 // pred_fallthru
      _
    %v53 = vld [vmem:[#allocation2] sm:$0xff]
    %v54 = vld [vmem:[#allocation3] sm:$0xf]
    %v55 = vld [vmem:[#allocation6] sm:$0xf]
    %v56 = vld [vmem:[#allocation6 + $0x4] sm:$0xf]
    %v57 = vld [vmem:[#allocation6 + $0x8] sm:$0xf]
    %v58 = vld [vmem:[#allocation6 + $0xc] sm:$0xf]
    %v59 = vld [vmem:[#allocation6 + $0x10] sm:$0xf]
    %v60 = vld [vmem:[#allocation6 + $0x14] sm:$0xf]
    %v61 = vld [vmem:[#allocation6 + $0x18] sm:$0xf]
    %v62 = vld [vmem:[#allocation6 + $0x1c] sm:$0xf]
    %v63 = vld [vmem:[#allocation6 + $0x20] sm:$0xf]
    %v64 = vld [vmem:[#allocation6 + $0x24] sm:$0xf]
    %v65 = vld [vmem:[#allocation6 + $0x28] sm:$0xf]
    %v66 = vld [vmem:[#allocation6 + $0x2c] sm:$0xf]
    %v67 = vld [vmem:[#allocation6 + $0x30] sm:$0xf]
    %v68 = vld [vmem:[#allocation6 + $0x34] sm:$0xf]
    %v69 = vld [vmem:[#allocation6 + $0x38] sm:$0xf]
    %v70 = vld [vmem:[#allocation6 + $0x3c] sm:$0xf]
    %v87 = vunpack.c.l.b16 %v55
    %v88 = vunpack.c.l.b16 %v56
    %v89 = vunpack.c.l.b16 %v57
    %v90 = vunpack.c.l.b16 %v58
    %v91 = vunpack.c.l.b16 %v59
    %v92 = vunpack.c.l.b16 %v60
    %v93 = vunpack.c.l.b16 %v61
    %v94 = vunpack.c.l.b16 %v62
    %v95 = vunpack.c.l.b16 %v63
    %v96 = vunpack.c.l.b16 %v64
    %v97 = vunpack.c.l.b16 %v65
    %v98 = vunpack.c.l.b16 %v66
    %v99 = vunpack.c.l.b16 %v67
    %v100 = vunpack.c.l.b16 %v68
    %v101 = vunpack.c.l.b16 %v69
    %v102 = vunpack.c.l.b16 %v70
    %v103 = vpack.c.b16 %v88, %v87
    %v104 = vpack.c.b16 %v90, %v89
    %v105 = vpack.c.b16 %v92, %v91
    %v106 = vpack.c.b16 %v94, %v93
    %v107 = vpack.c.b16 %v96, %v95
    %v108 = vpack.c.b16 %v98, %v97
    %v109 = vpack.c.b16 %v100, %v99
    %v110 = vpack.c.b16 %v102, %v101
    %119 = vmatpush.bf16.xpose.msra.mxu0 %v110
    %120 = vmatpush.bf16.xpose.msra.mxu0 %v109
    %121 = vmatpush.bf16.xpose.msra.mxu0 %v108
    %122 = vmatpush.bf16.xpose.msra.mxu0 %v107
    %123 = vmatpush.bf16.xpose.msra.mxu0 %v106
    %124 = vmatpush.bf16.xpose.msra.mxu0 %v105
    %125 = vmatpush.bf16.xpose.msra.mxu0 %v104
    %126 = vmatpush.bf16.xpose.msra.mxu0 %v103
    %127 = vmatmul.bf16.gmra.mxu0 %v54
    %v128 = vpop.f32.mrf.mxu0
    %v129 = vadd.f32 0.0, %v128
    %v130 = vpop.f32.mrf.mxu0
    %131 = vdwg.mxu0
    %v132 = vadd.f32 %v53, %v129
    %133 = vst [vmem:[#allocation2] sm:$0xff] %v132
    // Predicated region
    $region30: #{tpu_custom_call.1} parent=1 // pred_check
      %p134 = pneg %p48
    $region31: #{tpu_custom_call.1} parent=1 // pred_check_branch
      %136 = sbr.rel (%p134) target = $region33
    $region32: #{tpu_custom_call.1} parent=1 // pred_region
      %v137 = vld [vmem:[#allocation2] sm:$0xff]
      %v138 = vrot.slane %v137, 4
      %v139 = vadd.f32 %v137, %v138
      %v140 = vrot.slane %v139, 2
      %v141 = vadd.f32 %v139, %v140
      %v142 = vrot.slane %v141, 1
      %v143 = vadd.f32 %v141, %v142
      %v144 = vrcp.pop 8.0
      %v145 = vmul.f32 8.0, %v144
      %v146 = vsub.f32 1.0, %v145
      %v147 = vmul.f32 %v144, %v146
      %v148 = vadd.f32 %v144, %v147
      %vm149 = vweird.f32 %v144
      %v150 = vsel %vm149, %v144, %v148
      %v151 = vmul.f32 %v143, %v150
      %v152 = vmul.f32 %v137, %v137
      %v153 = vrot.slane %v152, 4
      %v154 = vadd.f32 %v152, %v153
      %v155 = vrot.slane %v154, 2
      %v156 = vadd.f32 %v154, %v155
      %v157 = vrot.slane %v156, 1
      %v158 = vadd.f32 %v156, %v157
      %v159 = vmul.f32 %v158, %v150
      %v160 = vmul.f32 %v151, %v151
      %v161 = vsub.f32 %v159, %v160
      %v162 = vmax.f32 %v161, 0.0
      %v163 = vld [vmem:[%s2] sm:$0x1]
      %v164 = vadd.f32 %v162, 1e-05
      %v165 = vrsqrt.pop %v164
      %v166 = vmul.f32 %v165, %v164
      %v167 = vmul.f32 %v166, %v165
      %v168 = vmul.f32 0.5, %v167
      %v169 = vsub.f32 1.5, %v168
      %v170 = vmul.f32 %v165, %v169
      %vm171 = vweird.f32 %v164
      %vm172 = vweird.f32 %v165
      %vm173 = vmor %vm171, %vm172
      %v174 = vsel %vm173, %v165, %v170
      %v175 = vmul.f32 %v163, %v174
      %v176 = vld [vmem:[%s3] sm:$0x1]
      %v177 = vmul.f32 %v151, %v175
      %v178 = vsub.f32 %v176, %v177
      %v180 = vperm.slane %v175, 0
      %v182 = vmul.f32 %v137, %v180
      %v184 = vperm.slane %v178, 0
      %v186 = vadd.f32 %v182, %v184
      %v187 = vtanh.pop %v186
      %v188 = vadd.f32 %v187, 1.0
      %189 = vst [vmem:[#allocation8] sm:$0xff] %v188
    $region33: #{tpu_custom_call.1} parent=1 // pred_fallthru
      _
    // Predicated region
    $region34: #{tpu_custom_call.1} parent=1 // pred_check
      _
    $region35: #{tpu_custom_call.1} parent=1 // pred_check_branch
      %191 = sbr.rel (0) target = $region37
    $region36: #{tpu_custom_call.1} parent=1 // pred_region
      %193 = vsyncadd [#allocation5], 0
      %s195 = sshll.u32 [#allocation8], 4
      %s196 = int_to_ptr.vmem [resolvable:$true] %s195
      %s197 = sshll.u32 %s4, 4
      %s198 = int_to_ptr.hbm [resolvable:$true] %s197
      %200 = dma.vmem_to_hbm [thread:$0]  %s196, 128, %s198, [#allocation5]
    $region37: #{tpu_custom_call.1} parent=1 // pred_fallthru
      _
    // Predicated region
    $region38: #{tpu_custom_call.1} parent=1 // pred_check
      _
    $region39: #{tpu_custom_call.1} parent=1 // pred_check_branch
      %202 = sbr.rel (0) target = $region41
    $region40: #{tpu_custom_call.1} parent=1 // pred_region
      %204 = dma.done [#allocation5], 128
    $region41: #{tpu_custom_call.1} parent=1 // pred_fallthru
      _
    %205 = vsyncpa [#allocation4], 1
    %206 = vsyncpa [#allocation7], 1
    %207 = vsyncpa [#allocation5], 1

</llo_original>
